<compile_context>
chip_gen: v5e
topology: v5e:2x2
jax: 0.10.0
libtpu: 0.0.40
codegen_flags: <defaults>
</compile_context>

<pallas_src>
import jax
import jax.numpy as jnp
from jax.experimental import pallas as pl
from jax.experimental.pallas import tpu as pltpu

LANE = 128


def _round_up(n, m):
    return ((n + m - 1) // m) * m


def critic_kernel(x_ref, w1_ref, b1_ref, w2_ref, b2_ref, w3_ref, b3_ref, o_ref):
    # One batch tile per grid step; weights/biases are VMEM-resident (constant index_map).
    x = x_ref[...].astype(jnp.bfloat16)                                # f32 HBM read, in-kernel cast
    h1 = jnp.dot(x, w1_ref[...], preferred_element_type=jnp.float32) + b1_ref[...]
    h1 = jnp.maximum(h1, 0.0).astype(jnp.bfloat16)                     # ReLU (VPU), back to bf16
    h2 = jnp.dot(h1, w2_ref[...], preferred_element_type=jnp.float32) + b2_ref[...]
    h2 = jnp.maximum(h2, 0.0).astype(jnp.bfloat16)
    out = jnp.dot(h2, w3_ref[...], preferred_element_type=jnp.float32) + b3_ref[...]
    o_ref[...] = out.astype(o_ref.dtype)                               # lane-dense bf16 [TB, 128] store


def _pick_tile(batch):
    """Batch tile: multiple of 8 sublanes, up to 1024 rows; keep >=2 grid steps when the
    batch is large enough so both v7x TensorCores get work (neutral on v5e/v6e)."""
    tb = min(1024, _round_up(batch, 8))
    if batch >= 512 and pl.cdiv(batch, tb) < 2:
        tb = _round_up(pl.cdiv(batch, 2), 8)
    return tb


def critic_forward(x, params):
    """x: [B, input_dim] float32. Returns [B, output_dim] float32 (PyTorch Critic.forward)."""
    w1, b1 = params["w1"], params["b1"]
    w2, b2 = params["w2"], params["b2"]
    w3, b3 = params["w3"], params["b3"]
    out_dim = params["out_dim"]                # logical (unpadded) output width

    B, in_dim = x.shape
    hidden = w1.shape[1]
    out_pad = w3.shape[1]                      # lane-padded output width (multiple of 128)

    TB = _pick_tile(B)
    grid = (pl.cdiv(B, TB),)                   # ragged last tile handled by Pallas (OOB writes dropped)

    flops = 2 * B * (in_dim * hidden + hidden * hidden + hidden * out_pad)
    bytes_accessed = (
        B * in_dim * 4                                         # x (f32 read)
        + (in_dim * hidden + hidden * hidden + hidden * out_pad) * 2   # weights (bf16)
        + (hidden + hidden + out_pad) * 4                      # biases (f32)
        + B * out_pad * 2                                      # output (bf16 write)
    )

    const = lambda i: (0, 0)                   # weights/biases resident across grid steps
    out = pl.pallas_call(
        critic_kernel,
        out_shape=jax.ShapeDtypeStruct((B, out_pad), jnp.bfloat16),
        grid=grid,
        in_specs=[
            pl.BlockSpec((TB, in_dim), lambda i: (i, 0)),      # x tile (double-buffered)
            pl.BlockSpec((in_dim, hidden), const),             # w1
            pl.BlockSpec((1, hidden), const),                  # b1
            pl.BlockSpec((hidden, hidden), const),             # w2
            pl.BlockSpec((1, hidden), const),                  # b2
            pl.BlockSpec((hidden, out_pad), const),            # w3 (lane-padded)
            pl.BlockSpec((1, out_pad), const),                 # b3 (lane-padded)
        ],
        out_specs=pl.BlockSpec((TB, out_pad), lambda i: (i, 0)),
        compiler_params=pltpu.CompilerParams(
            dimension_semantics=("parallel",),                 # v7x: shard batch tiles across 2 TCs
        ),
        cost_estimate=pl.CostEstimate(
            flops=flops, transcendentals=0, bytes_accessed=bytes_accessed
        ),
    )(x, w1, b1, w2, b2, w3, b3)

    # Keep this slice: rows >= B (ragged tile) and cols >= out_dim (lane padding) are garbage.
    return out[:B, :out_dim].astype(jnp.float32)


def init_params(key, input_dim, hidden_dim, output_dim):
    """Deterministic synthetic init (PyTorch-Linear-style uniform bounds).
    Weights stored bf16 [in, out]; biases f32 [1, out]; layer-3 zero-padded to 128 lanes."""
    ks = jax.random.split(key, 6)

    def linear(kw, kb, fan_in, fan_out):
        bound = 1.0 / jnp.sqrt(fan_in)
        w = jax.random.uniform(kw, (fan_in, fan_out), jnp.float32, -bound, bound)
        b = jax.random.uniform(kb, (1, fan_out), jnp.float32, -bound, bound)
        return w, b

    w1, b1 = linear(ks[0], ks[1], input_dim, hidden_dim)
    w2, b2 = linear(ks[2], ks[3], hidden_dim, hidden_dim)
    w3, b3 = linear(ks[4], ks[5], hidden_dim, output_dim)

    # Lane-dense final layer: pad output columns to a multiple of 128 with zeros.
    out_pad = _round_up(output_dim, LANE)
    w3 = jnp.pad(w3, ((0, 0), (0, out_pad - output_dim)))
    b3 = jnp.pad(b3, ((0, 0), (0, out_pad - output_dim)))

    return dict(
        w1=w1.astype(jnp.bfloat16), b1=b1,
        w2=w2.astype(jnp.bfloat16), b2=b2,
        w3=w3.astype(jnp.bfloat16), b3=b3,
        out_dim=output_dim,
    )


def critic_reference(x, params):
    """Pure-JAX reference with the same bf16-operand / f32-accumulate / bf16-store math."""
    xb = x.astype(jnp.bfloat16)
    h1 = jnp.maximum(
        jnp.dot(xb, params["w1"], preferred_element_type=jnp.float32) + params["b1"], 0.0
    ).astype(jnp.bfloat16)
    h2 = jnp.maximum(
        jnp.dot(h1, params["w2"], preferred_element_type=jnp.float32) + params["b2"], 0.0
    ).astype(jnp.bfloat16)
    out = jnp.dot(h2, params["w3"], preferred_element_type=jnp.float32) + params["b3"]
    out = out.astype(jnp.bfloat16).astype(jnp.float32)
    return out[:, : params["out_dim"]]


if __name__ == "__main__":
    # Gridworld-style shapes: flattened 4x4x4 state -> 64, hidden 128, 4 actions.
    B, INPUT_DIM, HIDDEN_DIM, OUTPUT_DIM = 2, 64, 128, 4

    key = jax.random.PRNGKey(0)
    kx, kp = jax.random.split(key)
    x = jax.random.normal(kx, (B, INPUT_DIM), dtype=jnp.float32)
    params = init_params(kp, INPUT_DIM, HIDDEN_DIM, OUTPUT_DIM)

    out = critic_forward(x, params)
    out = jax.block_until_ready(out)

    ref = critic_reference(x, params)
    assert out.shape == (B, OUTPUT_DIM), out.shape
    assert jnp.allclose(out, ref, atol=3e-2, rtol=3e-2), "mismatch vs JAX reference"

    print("KERNEL_OK")
</pallas_src>

<mosaic_0001>
module attributes {stable_mosaic.version = 11 : i64} {
  func.func @critic_kernel(%arg0: i32, %arg1: memref<8x64xf32, #tpu.memory_space<vmem>>, %arg2: memref<64x128xbf16, #tpu.memory_space<vmem>>, %arg3: memref<1x128xf32, #tpu.memory_space<vmem>>, %arg4: memref<128x128xbf16, #tpu.memory_space<vmem>>, %arg5: memref<1x128xf32, #tpu.memory_space<vmem>>, %arg6: memref<128x128xbf16, #tpu.memory_space<vmem>>, %arg7: memref<1x128xf32, #tpu.memory_space<vmem>>, %arg8: memref<8x128xbf16, #tpu.memory_space<vmem>>) attributes {dimension_semantics = [#tpu.dimension_semantics<parallel>], iteration_bounds = array<i64: 1>, scalar_prefetch = 0 : i64, scratch_operands = 0 : i64, tpu.core_type = #tpu.core_type<tc>, window_params = [{transform_indices = @transform_0, window_bounds = array<i64: 8, 64>}, {pipeline_mode = #tpu.pipeline_mode<synchronous>, transform_indices = @transform_1, window_bounds = array<i64: 64, 128>}, {pipeline_mode = #tpu.pipeline_mode<synchronous>, transform_indices = @transform_2, window_bounds = array<i64: 1, 128>}, {pipeline_mode = #tpu.pipeline_mode<synchronous>, transform_indices = @transform_3, window_bounds = array<i64: 128, 128>}, {pipeline_mode = #tpu.pipeline_mode<synchronous>, transform_indices = @transform_4, window_bounds = array<i64: 1, 128>}, {pipeline_mode = #tpu.pipeline_mode<synchronous>, transform_indices = @transform_5, window_bounds = array<i64: 128, 128>}, {pipeline_mode = #tpu.pipeline_mode<synchronous>, transform_indices = @transform_6, window_bounds = array<i64: 1, 128>}, {transform_indices = @transform_7, window_bounds = array<i64: 8, 128>}]} {
    %c0 = arith.constant 0 : index
    %c0_0 = arith.constant 0 : index
    %0 = vector.load %arg1[%c0, %c0_0] : memref<8x64xf32, #tpu.memory_space<vmem>>, vector<8x64xf32>
    %1 = arith.truncf %0 : vector<8x64xf32> to vector<8x64xbf16>
    %c0_1 = arith.constant 0 : index
    %c0_2 = arith.constant 0 : index
    %2 = vector.load %arg2[%c0_1, %c0_2] : memref<64x128xbf16, #tpu.memory_space<vmem>>, vector<64x128xbf16>
    %cst = arith.constant dense<0.000000e+00> : vector<8x128xf32>
    %3 = tpu.matmul %1, %2, %cst {dimension_numbers = #tpu.dot_dimension_numbers<[1], [0], [0], [1], [0, 0, 1, 1], [], []>} : vector<8x64xbf16>, vector<64x128xbf16>, vector<8x128xf32> -> vector<8x128xf32>
    %c0_3 = arith.constant 0 : index
    %c0_4 = arith.constant 0 : index
    %4 = vector.load %arg3[%c0_3, %c0_4] : memref<1x128xf32, #tpu.memory_space<vmem>>, vector<1x128xf32>
    %5 = vector.broadcast %4 : vector<1x128xf32> to vector<8x128xf32>
    %6 = arith.addf %3, %5 : vector<8x128xf32>
    %cst_5 = arith.constant 0.000000e+00 : f32
    %7 = vector.broadcast %cst_5 : f32 to vector<8x128xf32>
    %8 = arith.maximumf %6, %7 : vector<8x128xf32>
    %9 = arith.truncf %8 : vector<8x128xf32> to vector<8x128xbf16>
    %c0_6 = arith.constant 0 : index
    %c0_7 = arith.constant 0 : index
    %10 = vector.load %arg4[%c0_6, %c0_7] : memref<128x128xbf16, #tpu.memory_space<vmem>>, vector<128x128xbf16>
    %cst_8 = arith.constant dense<0.000000e+00> : vector<8x128xf32>
    %11 = tpu.matmul %9, %10, %cst_8 {dimension_numbers = #tpu.dot_dimension_numbers<[1], [0], [0], [1], [0, 0, 1, 1], [], []>} : vector<8x128xbf16>, vector<128x128xbf16>, vector<8x128xf32> -> vector<8x128xf32>
    %c0_9 = arith.constant 0 : index
    %c0_10 = arith.constant 0 : index
    %12 = vector.load %arg5[%c0_9, %c0_10] : memref<1x128xf32, #tpu.memory_space<vmem>>, vector<1x128xf32>
    %13 = vector.broadcast %12 : vector<1x128xf32> to vector<8x128xf32>
    %14 = arith.addf %11, %13 : vector<8x128xf32>
    %cst_11 = arith.constant 0.000000e+00 : f32
    %15 = vector.broadcast %cst_11 : f32 to vector<8x128xf32>
    %16 = arith.maximumf %14, %15 : vector<8x128xf32>
    %17 = arith.truncf %16 : vector<8x128xf32> to vector<8x128xbf16>
    %c0_12 = arith.constant 0 : index
    %c0_13 = arith.constant 0 : index
    %18 = vector.load %arg6[%c0_12, %c0_13] : memref<128x128xbf16, #tpu.memory_space<vmem>>, vector<128x128xbf16>
    %cst_14 = arith.constant dense<0.000000e+00> : vector<8x128xf32>
    %19 = tpu.matmul %17, %18, %cst_14 {dimension_numbers = #tpu.dot_dimension_numbers<[1], [0], [0], [1], [0, 0, 1, 1], [], []>} : vector<8x128xbf16>, vector<128x128xbf16>, vector<8x128xf32> -> vector<8x128xf32>
    %c0_15 = arith.constant 0 : index
    %c0_16 = arith.constant 0 : index
    %20 = vector.load %arg7[%c0_15, %c0_16] : memref<1x128xf32, #tpu.memory_space<vmem>>, vector<1x128xf32>
    %21 = vector.broadcast %20 : vector<1x128xf32> to vector<8x128xf32>
    %22 = arith.addf %19, %21 : vector<8x128xf32>
    %23 = arith.truncf %22 : vector<8x128xf32> to vector<8x128xbf16>
    %c0_17 = arith.constant 0 : index
    %c0_18 = arith.constant 0 : index
    %24 = vector.load %arg8[%c0_17, %c0_18] : memref<8x128xbf16, #tpu.memory_space<vmem>>, vector<8x128xbf16>
    tpu.vector_store %arg8[%c0_17, %c0_18], %23 {strides = array<i32>} : memref<8x128xbf16, #tpu.memory_space<vmem>>, vector<8x128xbf16>,
    return
  }
  func.func @transform_0(%arg0: i32) -> (i32, i32) {
    %c0_i32 = arith.constant 0 : i32
    %c0_i32_0 = arith.constant 0 : i32
    return %arg0, %c0_i32 : i32, i32
  }
  func.func @transform_1(%arg0: i32) -> (i32, i32) {
    %c0_i32 = arith.constant 0 : i32
    %c0_i32_0 = arith.constant 0 : i32
    %c0_i32_1 = arith.constant 0 : i32
    return %c0_i32, %c0_i32_0 : i32, i32
  }
  func.func @transform_2(%arg0: i32) -> (i32, i32) {
    %c0_i32 = arith.constant 0 : i32
    %c0_i32_0 = arith.constant 0 : i32
    %c0_i32_1 = arith.constant 0 : i32
    return %c0_i32, %c0_i32_0 : i32, i32
  }
  func.func @transform_3(%arg0: i32) -> (i32, i32) {
    %c0_i32 = arith.constant 0 : i32
    %c0_i32_0 = arith.constant 0 : i32
    %c0_i32_1 = arith.constant 0 : i32
    return %c0_i32, %c0_i32_0 : i32, i32
  }
  func.func @transform_4(%arg0: i32) -> (i32, i32) {
    %c0_i32 = arith.constant 0 : i32
    %c0_i32_0 = arith.constant 0 : i32
    %c0_i32_1 = arith.constant 0 : i32
    return %c0_i32, %c0_i32_0 : i32, i32
  }
  func.func @transform_5(%arg0: i32) -> (i32, i32) {
    %c0_i32 = arith.constant 0 : i32
    %c0_i32_0 = arith.constant 0 : i32
    %c0_i32_1 = arith.constant 0 : i32
    return %c0_i32, %c0_i32_0 : i32, i32
  }
  func.func @transform_6(%arg0: i32) -> (i32, i32) {
    %c0_i32 = arith.constant 0 : i32
    %c0_i32_0 = arith.constant 0 : i32
    %c0_i32_1 = arith.constant 0 : i32
    return %c0_i32, %c0_i32_0 : i32, i32
  }
  func.func @transform_7(%arg0: i32) -> (i32, i32) {
    %c0_i32 = arith.constant 0 : i32
    %c0_i32_0 = arith.constant 0 : i32
    return %arg0, %c0_i32 : i32, i32
  }
}

</mosaic_0001>

<llo_original>
// kernel: tpu_custom_call.1
$region0: #{tpu_custom_call.1}
  #allocation0 [shape = 'u32[]', space=smem, size = 0x4, offset = 0x4, fixed_abs, tag = 'smem constant byte address 0x4 - core index']
  #allocation1 [shape = 'u32[72,128]{1,0:T(1,128)}', space=vmem, size = 0x9000, scoped, tag = 'internal scratch']
  %s0 = inlined_call_operand.hbm [shape: f32[2,64], index: 0, kind: input, shape index: {}]
  %s1 = inlined_call_operand.hbm [shape: bf16[64,128], index: 1, kind: input, shape index: {}]
  %s2 = inlined_call_operand.vmem [shape: f32[1,128], index: 2, kind: input, shape index: {}]
  %s3 = inlined_call_operand.hbm [shape: bf16[128,128], index: 3, kind: input, shape index: {}]
  %s4 = inlined_call_operand.vmem [shape: f32[1,128], index: 4, kind: input, shape index: {}]
  %s5 = inlined_call_operand.hbm [shape: bf16[128,128], index: 5, kind: input, shape index: {}]
  %s6 = inlined_call_operand.vmem [shape: f32[1,128], index: 6, kind: input, shape index: {}]
  %s7 = inlined_call_operand.hbm [shape: bf16[2,128], index: 7, kind: output, shape index: {}]
  %s8 = sld [smem:[#allocation0]]
  $region54: #{tpu_custom_call.1} parent=0
    _
  %s10 = ssub.s32 1, %s8
  %s11 = scalar_select 0, %s10, %s8
  $region1: #{tpu_custom_call.1} parent=0
    #allocation2 [shape = 'u8[4096]{0}', space=vmem, size = 0x1000, scoped, tag = 'input window, operand 0, single buffered']
    #allocation3 [shape = 's32[1]{0}', space=sflag, size = 0x4, scoped, tag = 'scoped memory for tpu_custom_call.1']
    #allocation4 [shape = 's32[1]{0}', space=sflag, size = 0x4, scoped, tag = 'scoped memory for tpu_custom_call.1']
    #allocation5 [shape = 'u8[16384]{0}', space=vmem, size = 0x4000, scoped, tag = 'input window, operand 1, single buffered']
    #allocation6 [shape = 's32[1]{0}', space=sflag, size = 0x4, scoped, tag = 'scoped memory for tpu_custom_call.1']
    #allocation7 [shape = 'u8[32768]{0}', space=vmem, size = 0x8000, scoped, tag = 'input window, operand 3, single buffered']
    #allocation8 [shape = 'u8[32768]{0}', space=vmem, size = 0x8000, scoped, tag = 'input window, operand 5, single buffered']
    #allocation9 [shape = 's32[1]{0}', space=sflag, size = 0x4, scoped, tag = 'scoped memory for tpu_custom_call.1']
    #allocation10 [shape = 'u8[2048]{0}', space=vmem, size = 0x800, scoped, tag = 'output window, operand 0, single buffered']
    %12 = vsyncpa [#allocation3], 0
    %13 = vsyncpa [#allocation6], 0
    %14 = vsyncpa [#allocation9], 0
    %15 = vsyncpa [#allocation4], 0
    // Predicated region
    $region2: #{tpu_custom_call.1} parent=1 // pred_check
      _
    $region3: #{tpu_custom_call.1} parent=1 // pred_check_branch
      %17 = sbr.rel (0) target = $region5
    $region4: #{tpu_custom_call.1} parent=1 // pred_region
      %19 = vsyncadd [#allocation3], 96
      %s20 = sshll.u32 %s0, 4
      %s21 = int_to_ptr.hbm [resolvable:$true] %s20
      %s22 = sshll.u32 [#allocation2], 4
      %s23 = int_to_ptr.vmem [resolvable:$true] %s22
      %28 = dma.hbm_to_vmem [thread:$0]  %s21, 32, %s23, [#allocation3], 32, 32, 2
    $region5: #{tpu_custom_call.1} parent=1 // pred_fallthru
      _
    // Predicated region
    $region6: #{tpu_custom_call.1} parent=1 // pred_check
      _
    $region7: #{tpu_custom_call.1} parent=1 // pred_check_branch
      %30 = sbr.rel (0) target = $region9
    $region8: #{tpu_custom_call.1} parent=1 // pred_region
      %32 = vsyncadd [#allocation6], 0
      %s33 = sshll.u32 %s1, 4
      %s34 = int_to_ptr.hbm [resolvable:$true] %s33
      %s35 = sshll.u32 [#allocation5], 4
      %s36 = int_to_ptr.vmem [resolvable:$true] %s35
      %41 = dma.hbm_to_vmem [thread:$0]  %s34, 512, %s36, [#allocation6], 64, 64, 4
    $region9: #{tpu_custom_call.1} parent=1 // pred_fallthru
      _
    // Predicated region
    $region10: #{tpu_custom_call.1} parent=1 // pred_check
      _
    $region11: #{tpu_custom_call.1} parent=1 // pred_check_branch
      %43 = sbr.rel (0) target = $region13
    $region12: #{tpu_custom_call.1} parent=1 // pred_region
      _
    $region13: #{tpu_custom_call.1} parent=1 // pred_fallthru
      _
    // Predicated region
    $region14: #{tpu_custom_call.1} parent=1 // pred_check
      _
    $region15: #{tpu_custom_call.1} parent=1 // pred_check_branch
      %45 = sbr.rel (0) target = $region17
    $region16: #{tpu_custom_call.1} parent=1 // pred_region
      %47 = vsyncadd [#allocation6], 0
      %s48 = sshll.u32 %s3, 4
      %s49 = int_to_ptr.hbm [resolvable:$true] %s48
      %s50 = sshll.u32 [#allocation7], 4
      %s51 = int_to_ptr.vmem [resolvable:$true] %s50
      %56 = dma.hbm_to_vmem [thread:$0]  %s49, 1024, %s51, [#allocation6], 64, 64, 4
    $region17: #{tpu_custom_call.1} parent=1 // pred_fallthru
      _
    // Predicated region
    $region18: #{tpu_custom_call.1} parent=1 // pred_check
      _
    $region19: #{tpu_custom_call.1} parent=1 // pred_check_branch
      %58 = sbr.rel (0) target = $region21
    $region20: #{tpu_custom_call.1} parent=1 // pred_region
      _
    $region21: #{tpu_custom_call.1} parent=1 // pred_fallthru
      _
    // Predicated region
    $region22: #{tpu_custom_call.1} parent=1 // pred_check
      _
    $region23: #{tpu_custom_call.1} parent=1 // pred_check_branch
      %60 = sbr.rel (0) target = $region25
    $region24: #{tpu_custom_call.1} parent=1 // pred_region
      %62 = vsyncadd [#allocation9], 0
      %s63 = sshll.u32 %s5, 4
      %s64 = int_to_ptr.hbm [resolvable:$true] %s63
      %s65 = sshll.u32 [#allocation8], 4
      %s66 = int_to_ptr.vmem [resolvable:$true] %s65
      %71 = dma.hbm_to_vmem [thread:$0]  %s64, 1024, %s66, [#allocation9], 64, 64, 4
    $region25: #{tpu_custom_call.1} parent=1 // pred_fallthru
      _
    // Predicated region
    $region26: #{tpu_custom_call.1} parent=1 // pred_check
      _
    $region27: #{tpu_custom_call.1} parent=1 // pred_check_branch
      %73 = sbr.rel (0) target = $region29
    $region28: #{tpu_custom_call.1} parent=1 // pred_region
      _
    $region29: #{tpu_custom_call.1} parent=1 // pred_fallthru
      _
    // Predicated region
    $region30: #{tpu_custom_call.1} parent=1 // pred_check
      _
    $region31: #{tpu_custom_call.1} parent=1 // pred_check_branch
      %75 = sbr.rel (0) target = $region33
    $region32: #{tpu_custom_call.1} parent=1 // pred_region
      %77 = dma.done [#allocation3], 128
    $region33: #{tpu_custom_call.1} parent=1 // pred_fallthru
      _
    // Predicated region
    $region34: #{tpu_custom_call.1} parent=1 // pred_check
      _
    $region35: #{tpu_custom_call.1} parent=1 // pred_check_branch
      %79 = sbr.rel (0) target = $region37
    $region36: #{tpu_custom_call.1} parent=1 // pred_region
      %81 = dma.done [#allocation6], 512
    $region37: #{tpu_custom_call.1} parent=1 // pred_fallthru
      _
    // Predicated region
    $region38: #{tpu_custom_call.1} parent=1 // pred_check
      _
    $region39: #{tpu_custom_call.1} parent=1 // pred_check_branch
      %83 = sbr.rel (0) target = $region41
    $region40: #{tpu_custom_call.1} parent=1 // pred_region
      %85 = dma.done [#allocation6], 1024
    $region41: #{tpu_custom_call.1} parent=1 // pred_fallthru
      _
    // Predicated region
    $region42: #{tpu_custom_call.1} parent=1 // pred_check
      _
    $region43: #{tpu_custom_call.1} parent=1 // pred_check_branch
      %87 = sbr.rel (0) target = $region45
    $region44: #{tpu_custom_call.1} parent=1 // pred_region
      %89 = dma.done [#allocation9], 1024
    $region45: #{tpu_custom_call.1} parent=1 // pred_fallthru
      _
    %v91 = vld [vmem:[#allocation2] sm:$0xff]
    %v92 = vpack.c.bf16 %v91, %v91
    %v93 = vld [vmem:[#allocation5] sm:$0xf]
    %v94 = vld [vmem:[#allocation5 + $0x4] sm:$0xf]
    %v95 = vld [vmem:[#allocation5 + $0x8] sm:$0xf]
    %v96 = vld [vmem:[#allocation5 + $0xc] sm:$0xf]
    %v97 = vld [vmem:[#allocation5 + $0x10] sm:$0xf]
    %v98 = vld [vmem:[#allocation5 + $0x14] sm:$0xf]
    %v99 = vld [vmem:[#allocation5 + $0x18] sm:$0xf]
    %v100 = vld [vmem:[#allocation5 + $0x1c] sm:$0xf]
    %v101 = vld [vmem:[%s2] sm:$0x1]
    %v103 = vperm.slane %v101, 0
    %v113 = vunpack.c.l.b16 %v93
    %v114 = vunpack.c.l.b16 %v94
    %v115 = vunpack.c.l.b16 %v95
    %v116 = vunpack.c.l.b16 %v96
    %v117 = vunpack.c.l.b16 %v97
    %v118 = vunpack.c.l.b16 %v98
    %v119 = vunpack.c.l.b16 %v99
    %v120 = vunpack.c.l.b16 %v100
    %v121 = vpack.c.b16 %v114, %v113
    %v122 = vpack.c.b16 %v116, %v115
    %v123 = vpack.c.b16 %v118, %v117
    %v124 = vpack.c.b16 %v120, %v119
    %vm129 = vcmask 523264
    %v131 = vsel %vm129, %v92, 0
    %133 = vmatpush.bf16.msra.mxu0 0
    %134 = vmatpush.bf16.msra.mxu0 0
    %135 = vmatpush.bf16.msra.mxu0 0
    %136 = vmatpush.bf16.msra.mxu0 0
    %137 = vmatpush.bf16.msra.mxu0 %v124
    %138 = vmatpush.bf16.msra.mxu0 %v123
    %139 = vmatpush.bf16.msra.mxu0 %v122
    %140 = vmatpush.bf16.msra.mxu0 %v121
    %141 = vmatmul.bf16.gmra.mxu0 %v131
    %v142 = vpop.f32.mrf.mxu0
    %v143 = vadd.f32 %v103, %v142
    %v144 = vpop.f32.mrf.mxu0
    %145 = vdwg.mxu0
    %v146 = vmax.f32 %v143, 0.0
    %v147 = vpack.c.bf16 %v146, %v146
    %v148 = vld [vmem:[#allocation7] sm:$0xf]
    %v149 = vld [vmem:[#allocation7 + $0x4] sm:$0xf]
    %v150 = vld [vmem:[#allocation7 + $0x8] sm:$0xf]
    %v151 = vld [vmem:[#allocation7 + $0xc] sm:$0xf]
    %v152 = vld [vmem:[#allocation7 + $0x10] sm:$0xf]
    %v153 = vld [vmem:[#allocation7 + $0x14] sm:$0xf]
    %v154 = vld [vmem:[#allocation7 + $0x18] sm:$0xf]
    %v155 = vld [vmem:[#allocation7 + $0x1c] sm:$0xf]
    %v156 = vld [vmem:[#allocation7 + $0x20] sm:$0xf]
    %v157 = vld [vmem:[#allocation7 + $0x24] sm:$0xf]
    %v158 = vld [vmem:[#allocation7 + $0x28] sm:$0xf]
    %v159 = vld [vmem:[#allocation7 + $0x2c] sm:$0xf]
    %v160 = vld [vmem:[#allocation7 + $0x30] sm:$0xf]
    %v161 = vld [vmem:[#allocation7 + $0x34] sm:$0xf]
    %v162 = vld [vmem:[#allocation7 + $0x38] sm:$0xf]
    %v163 = vld [vmem:[#allocation7 + $0x3c] sm:$0xf]
    %v164 = vld [vmem:[%s4] sm:$0x1]
    %v166 = vperm.slane %v164, 0
    %v184 = vunpack.c.l.b16 %v148
    %v185 = vunpack.c.l.b16 %v149
    %v186 = vunpack.c.l.b16 %v150
    %v187 = vunpack.c.l.b16 %v151
    %v188 = vunpack.c.l.b16 %v152
    %v189 = vunpack.c.l.b16 %v153
    %v190 = vunpack.c.l.b16 %v154
    %v191 = vunpack.c.l.b16 %v155
    %v192 = vunpack.c.l.b16 %v156
    %v193 = vunpack.c.l.b16 %v157
    %v194 = vunpack.c.l.b16 %v158
    %v195 = vunpack.c.l.b16 %v159
    %v196 = vunpack.c.l.b16 %v160
    %v197 = vunpack.c.l.b16 %v161
    %v198 = vunpack.c.l.b16 %v162
    %v199 = vunpack.c.l.b16 %v163
    %v200 = vpack.c.b16 %v185, %v184
    %v201 = vpack.c.b16 %v187, %v186
    %v202 = vpack.c.b16 %v189, %v188
    %v203 = vpack.c.b16 %v191, %v190
    %v204 = vpack.c.b16 %v193, %v192
    %v205 = vpack.c.b16 %v195, %v194
    %v206 = vpack.c.b16 %v197, %v196
    %v207 = vpack.c.b16 %v199, %v198
    %216 = vmatpush.bf16.msra.mxu0 %v207
    %217 = vmatpush.bf16.msra.mxu0 %v206
    %218 = vmatpush.bf16.msra.mxu0 %v205
    %219 = vmatpush.bf16.msra.mxu0 %v204
    %220 = vmatpush.bf16.msra.mxu0 %v203
    %221 = vmatpush.bf16.msra.mxu0 %v202
    %222 = vmatpush.bf16.msra.mxu0 %v201
    %223 = vmatpush.bf16.msra.mxu0 %v200
    %224 = vmatmul.bf16.gmra.mxu0 %v147
    %v225 = vpop.f32.mrf.mxu0
    %v226 = vadd.f32 %v166, %v225
    %v227 = vpop.f32.mrf.mxu0
    %228 = vdwg.mxu0
    %v229 = vmax.f32 %v226, 0.0
    %v230 = vpack.c.bf16 %v229, %v229
    %v231 = vld [vmem:[#allocation8] sm:$0xf]
    %v232 = vld [vmem:[#allocation8 + $0x4] sm:$0xf]
    %v233 = vld [vmem:[#allocation8 + $0x8] sm:$0xf]
    %v234 = vld [vmem:[#allocation8 + $0xc] sm:$0xf]
    %v235 = vld [vmem:[#allocation8 + $0x10] sm:$0xf]
    %v236 = vld [vmem:[#allocation8 + $0x14] sm:$0xf]
    %v237 = vld [vmem:[#allocation8 + $0x18] sm:$0xf]
    %v238 = vld [vmem:[#allocation8 + $0x1c] sm:$0xf]
    %v239 = vld [vmem:[#allocation8 + $0x20] sm:$0xf]
    %v240 = vld [vmem:[#allocation8 + $0x24] sm:$0xf]
    %v241 = vld [vmem:[#allocation8 + $0x28] sm:$0xf]
    %v242 = vld [vmem:[#allocation8 + $0x2c] sm:$0xf]
    %v243 = vld [vmem:[#allocation8 + $0x30] sm:$0xf]
    %v244 = vld [vmem:[#allocation8 + $0x34] sm:$0xf]
    %v245 = vld [vmem:[#allocation8 + $0x38] sm:$0xf]
    %v246 = vld [vmem:[#allocation8 + $0x3c] sm:$0xf]
    %v247 = vld [vmem:[%s6] sm:$0x1]
    %v249 = vperm.slane %v247, 0
    %v267 = vunpack.c.l.b16 %v231
    %v268 = vunpack.c.l.b16 %v232
    %v269 = vunpack.c.l.b16 %v233
    %v270 = vunpack.c.l.b16 %v234
    %v271 = vunpack.c.l.b16 %v235
    %v272 = vunpack.c.l.b16 %v236
    %v273 = vunpack.c.l.b16 %v237
    %v274 = vunpack.c.l.b16 %v238
    %v275 = vunpack.c.l.b16 %v239
    %v276 = vunpack.c.l.b16 %v240
    %v277 = vunpack.c.l.b16 %v241
    %v278 = vunpack.c.l.b16 %v242
    %v279 = vunpack.c.l.b16 %v243
    %v280 = vunpack.c.l.b16 %v244
    %v281 = vunpack.c.l.b16 %v245
    %v282 = vunpack.c.l.b16 %v246
    %v283 = vpack.c.b16 %v268, %v267
    %v284 = vpack.c.b16 %v270, %v269
    %v285 = vpack.c.b16 %v272, %v271
    %v286 = vpack.c.b16 %v274, %v273
    %v287 = vpack.c.b16 %v276, %v275
    %v288 = vpack.c.b16 %v278, %v277
    %v289 = vpack.c.b16 %v280, %v279
    %v290 = vpack.c.b16 %v282, %v281
    %299 = vmatpush.bf16.msra.mxu0 %v290
    %300 = vmatpush.bf16.msra.mxu0 %v289
    %301 = vmatpush.bf16.msra.mxu0 %v288
    %302 = vmatpush.bf16.msra.mxu0 %v287
    %303 = vmatpush.bf16.msra.mxu0 %v286
    %304 = vmatpush.bf16.msra.mxu0 %v285
    %305 = vmatpush.bf16.msra.mxu0 %v284
    %306 = vmatpush.bf16.msra.mxu0 %v283
    %307 = vmatmul.bf16.gmra.mxu0 %v230
    %v308 = vpop.f32.mrf.mxu0
    %v309 = vadd.f32 %v249, %v308
    %v310 = vpop.f32.mrf.mxu0
    %311 = vdwg.mxu0
    %v312 = vpack.c.bf16 %v309, %v309
    %v314 = vrot.slane %v312, 3
    %vm315 = vcmask 1040384
    %v318 = vsel %vm315, %v312, %v314
    %vm319 = vcmask 1041409
    %v320 = vsel %vm319, %v312, %v314
    %v322 = vrot.slane %v320, 1
    %vm323 = vcmask 1042434
    %v324 = vsel %vm323, %v312, %v314
    %v326 = vrot.slane %v324, 2
    %vm327 = vcmask 1043459
    %v328 = vsel %vm327, %v312, %v314
    %v330 = vrot.slane %v328, 3
    %335 = vst [vmem:[#allocation10] sm:$0x1] %v318
    %336 = vst [vmem:[#allocation10 + $0x1] sm:$0x1] %v322
    %337 = vst [vmem:[#allocation10 + $0x2] sm:$0x1] %v326
    %338 = vst [vmem:[#allocation10 + $0x3] sm:$0x1] %v330
    // Predicated region
    $region46: #{tpu_custom_call.1} parent=1 // pred_check
      _
    $region47: #{tpu_custom_call.1} parent=1 // pred_check_branch
      %340 = sbr.rel (0) target = $region49
    $region48: #{tpu_custom_call.1} parent=1 // pred_region
      %342 = vsyncadd [#allocation4], 48
      %s343 = sshll.u32 [#allocation10], 4
      %s344 = int_to_ptr.vmem [resolvable:$true] %s343
      %s345 = sshll.u32 %s7, 4
      %s346 = int_to_ptr.hbm [resolvable:$true] %s345
      %351 = dma.vmem_to_hbm [thread:$0]  %s344, 16, %s346, [#allocation4], 16, 16, 1
    $region49: #{tpu_custom_call.1} parent=1 // pred_fallthru
      _
    // Predicated region
    $region50: #{tpu_custom_call.1} parent=1 // pred_check
      _
    $region51: #{tpu_custom_call.1} parent=1 // pred_check_branch
      %353 = sbr.rel (0) target = $region53
    $region52: #{tpu_custom_call.1} parent=1 // pred_region
      %355 = dma.done [#allocation4], 64
    $region53: #{tpu_custom_call.1} parent=1 // pred_fallthru
      _
    %356 = vsyncpa [#allocation3], 1
    %357 = vsyncpa [#allocation6], 1
    %358 = vsyncpa [#allocation9], 1
    %359 = vsyncpa [#allocation4], 1

</llo_original>
